<compile_context>
chip_gen: v7x
topology: tpu7x:2x2x1
jax: 0.10.0
libtpu: 0.0.40
codegen_flags: <defaults>
</compile_context>

<pallas_src>
import functools

import jax
import jax.numpy as jnp
from jax.experimental import pallas as pl
from jax.experimental.pallas import tpu as pltpu

# Flip to True to compute the sigmoid as pl.reciprocal(1+exp(-x), approx=True)
# (moves the divide to the free EUP slot; ~1e-4-class relative error).  Kept
# False so results match the PyTorch module's 1/(1+exp(-x)) exactly.
_APPROX_RECIPROCAL = False

_ROW_BUDGET_BYTES = 10 << 20     # ~10 MiB f32-equivalent working set per step
_SPLIT_THRESHOLD = 4 << 20       # split a single-tile batch beyond this size


def _round_up(x, m):
    return ((x + m - 1) // m) * m


def _vmem_capacity_bytes():
    """Physical per-core VMEM (v5e/v6e: 128 MiB, v7x: 64 MiB); safe fallback."""
    try:
        cap = getattr(pltpu.get_tpu_info(), "vmem_capacity_bytes", None)
        if cap:
            return int(cap)
    except Exception:
        pass
    return 64 << 20


def _mcwcel_kernel(logits_ref, lab_ref, part_ref, *,
                   num_category, batch_size, tb, ragged, block_c):
    """One batch tile: sigmoid + weighted-BCE partial sums -> 128-lane vector."""
    if block_c > num_category:
        # Static column slice down to the categories actually used.
        # TODO(synk): if this narrowing slice ever shows up as a relayout copy
        # in the bundle dump, switch to full-width compute + lane-iota mask.
        x = logits_ref[:, :num_category].astype(jnp.float32)
    else:
        x = logits_ref[...].astype(jnp.float32)
    lab = lab_ref[...].astype(jnp.float32)

    eps = jnp.float32(1e-32)
    den = 1.0 + jnp.exp(-x)                         # EUP exp
    if _APPROX_RECIPROCAL:
        sig = pl.reciprocal(den, approx=True)       # EUP vrcp (free slot)
    else:
        sig = 1.0 / den                             # torch-exact sigmoid
    pos = lab * jnp.log(sig + eps)                  # labels * log(p + eps)
    neg = (1.0 - lab) * jnp.log(1.0 - sig + eps)

    if ragged:
        # Only emitted when B % tb != 0: discard the padded rows of the last
        # block with lane selects (NOT multiply-by-mask: 0 * NaN would leak).
        rows_left = batch_size - pl.program_id(0) * tb
        row = jax.lax.broadcasted_iota(jnp.int32, pos.shape, 0)
        valid = row < rows_left
        zero = jnp.float32(0.0)
        pos = jnp.where(valid, pos, zero)
        neg = jnp.where(valid, neg, zero)
        lab = jnp.where(valid, lab, zero)

    s_pos = jnp.sum(pos)
    s_neg = jnp.sum(neg)
    n_p = jnp.sum(lab)

    # Lane-dense partial-sum vector: lanes 0/1/2 carry the three partials.
    lane = jax.lax.broadcasted_iota(jnp.int32, (1, 1, 128), 2)
    part_ref[...] = jnp.where(lane == 0, s_pos,
                              jnp.where(lane == 1, s_neg,
                                        jnp.where(lane == 2, n_p,
                                                  jnp.float32(0.0))))


def _pick_tile_rows(batch_size, row_f32_bytes):
    """Rows per grid step: large tiles (amortize ~0.35us/step), multiple of 8,
    snapped to a divisor of B when possible, and >= 2 tiles for big batches so
    the parallel axis can use both v7x TensorCores."""
    max_rows = max(8, (_ROW_BUDGET_BYTES // max(row_f32_bytes, 1)) // 8 * 8)
    if batch_size <= max_rows:
        if batch_size * row_f32_bytes > _SPLIT_THRESHOLD and batch_size >= 16:
            tb = _round_up((batch_size + 1) // 2, 8)   # ~half, multiple of 8
            if tb < batch_size:
                return tb
        return batch_size                              # single full-dim tile
    lo = max(8, (max_rows // 2) // 8 * 8)
    for d in range(max_rows, lo - 1, -8):
        if batch_size % d == 0:                        # divisor -> never ragged
            return d
    return max_rows


def mcwcel(output, labels, tile_rows=None):
    """JAX/Pallas equivalent of MCWCEL.forward(output, labels).

    output: [B, C_out] logits (C_out >= num_category); any float dtype — feed
            bf16 straight from the producer, the kernel upcasts to f32.
    labels: [B, num_category] in {0, 1}; any float/int dtype (int8 is fine).
    Returns (cel_sum, cel_sum) as 0-d float32 arrays.
    """
    batch_size, num_category = labels.shape
    c_out = output.shape[1]
    assert c_out >= num_category, "output must carry >= num_category channels"
    orig_total = batch_size * num_category

    # Lane-densification fast path: when the logits carry exactly the used
    # categories and B*C is a multiple of 128, a contiguous (free) reshape to
    # a 128k-wide slab fills every vreg lane — the big win for small C.
    if (tile_rows is None and c_out == num_category
            and num_category % 128 != 0):
        for lane_w in (512, 256, 128):
            if orig_total % lane_w == 0:
                rows = orig_total // lane_w
                output = output.reshape(rows, lane_w)
                labels = labels.reshape(rows, lane_w)
                batch_size, num_category, c_out = rows, lane_w, lane_w
                break

    # Logits block width: never DMA head columns the loss does not read.
    w128 = _round_up(num_category, 128)
    block_c = c_out if w128 >= c_out else w128       # multiple of 128 if trimmed

    row_f32 = (block_c + num_category) * 4           # f32 working bytes / row
    if tile_rows is None:
        tb = _pick_tile_rows(batch_size, row_f32)
    else:
        tb = min(tile_rows, batch_size)
        assert tb == batch_size or tb % 8 == 0, "tile_rows must be mult. of 8"

    n_tiles = (batch_size + tb - 1) // tb
    ragged = (batch_size % tb) != 0

    # Scoped-VMEM request: generous enough for double-buffered inputs plus the
    # elementwise f32 temporaries of a ~10 MiB tile, clamped below physical
    # VMEM (v7x: 64 MiB/core).  v5e's 16 MiB scoped default would otherwise
    # reject the big tiles even though it has 128 MiB physically.
    vmem_limit = int(max(32 << 20,
                         min(_vmem_capacity_bytes() - (8 << 20), 100 << 20)))

    kernel = functools.partial(_mcwcel_kernel,
                               num_category=num_category,
                               batch_size=batch_size,
                               tb=tb,
                               ragged=ragged,
                               block_c=block_c)

    partials = pl.pallas_call(
        kernel,
        out_shape=jax.ShapeDtypeStruct((n_tiles, 1, 128), jnp.float32),
        grid=(n_tiles,),
        in_specs=[
            pl.BlockSpec((tb, block_c), lambda i: (i, 0)),
            pl.BlockSpec((tb, num_category), lambda i: (i, 0)),
        ],
        out_specs=pl.BlockSpec((1, 1, 128), lambda i: (i, 0, 0)),
        compiler_params=pltpu.CompilerParams(
            dimension_semantics=("parallel",),
            vmem_limit_bytes=vmem_limit),
    )(output, labels)

    # Tiny final reduction + alpha weighting in plain JAX (scalar work only).
    sums = jnp.sum(partials.reshape(n_tiles, 128), axis=0)
    s_pos, s_neg, n_p = sums[0], sums[1], sums[2]

    total = float(orig_total)
    inv_total = 1.0 / total                          # hoisted Python constant
    alpha_p = n_p * inv_total
    alpha_n = (total - n_p) * inv_total
    cel_sum = -alpha_n * (s_pos * inv_total) - alpha_p * (s_neg * inv_total)

    # TODO(synk): torch.isnan(cel_sum) -> pdb.set_trace() debugger hook has no
    # kernel-side equivalent; NaN would simply propagate.
    return cel_sum, cel_sum


def _reference(output, labels):
    """Pure-JAX reference mirroring the PyTorch forward, for validation."""
    batch_size, num_category = labels.shape
    eps = 1e-32
    outs_sig = jax.nn.sigmoid(output[:, :num_category].astype(jnp.float32))
    outs_sig = outs_sig.reshape(batch_size * num_category)
    lab = labels.reshape(batch_size * num_category).astype(jnp.float32)
    total = batch_size * num_category
    num_p = lab.sum()
    alpha_p = num_p / total
    alpha_n = (total - num_p) / total
    pos_loss = lab * jnp.log(outs_sig + eps)
    neg_loss = (1.0 - lab) * jnp.log(1.0 - outs_sig + eps)
    return -alpha_n * pos_loss.mean() - alpha_p * neg_loss.mean()


if __name__ == "__main__":
    key = jax.random.PRNGKey(0)
    ks = jax.random.split(key, 8)

    # Case 1: tiny shapes consistent with the module (single-tile path,
    # c_out > num_category -> in-kernel column slice).
    batch_size, num_category, out_channels = 2, 4, 6
    output = jax.random.normal(ks[0], (batch_size, out_channels), jnp.float32)
    labels = (jax.random.uniform(ks[1], (batch_size, num_category)) > 0.5
              ).astype(jnp.float32)
    cel_a, cel_b = mcwcel(output, labels)
    jax.block_until_ready((cel_a, cel_b))
    ref = _reference(output, labels)
    assert jnp.allclose(cel_a, ref, rtol=1e-4, atol=1e-6), (cel_a, ref)
    assert jnp.allclose(cel_a, cel_b)

    # Case 2: force the tiled + ragged-tail path (grid of 3, last tile masked).
    batch2 = 20
    output2 = jax.random.normal(ks[2], (batch2, out_channels), jnp.float32)
    labels2 = (jax.random.uniform(ks[3], (batch2, num_category)) > 0.5
               ).astype(jnp.float32)
    cel2, _ = mcwcel(output2, labels2, tile_rows=8)
    jax.block_until_ready(cel2)
    ref2 = _reference(output2, labels2)
    assert jnp.allclose(cel2, ref2, rtol=1e-4, atol=1e-6), (cel2, ref2)

    # Case 3: lane-densification fast path (c_out == num_category, B*C % 128
    # == 0 -> free reshape to a 512-wide slab), bf16 logits from the producer.
    b3, c3 = 64, 32
    output3 = jax.random.normal(ks[4], (b3, c3), jnp.float32).astype(jnp.bfloat16)
    labels3 = (jax.random.uniform(ks[5], (b3, c3)) > 0.5).astype(jnp.float32)
    cel3, _ = mcwcel(output3, labels3)
    jax.block_until_ready(cel3)
    ref3 = _reference(output3, labels3)
    assert jnp.allclose(cel3, ref3, rtol=1e-4, atol=1e-6), (cel3, ref3)

    # Case 4: wide head with trimmed logits block (c_out=384, used C=256 ->
    # block width 256, a lane-aligned window; unused columns never DMA'd).
    b4, c4, co4 = 16, 256, 384
    output4 = jax.random.normal(ks[6], (b4, co4), jnp.float32)
    labels4 = (jax.random.uniform(ks[7], (b4, c4)) > 0.5).astype(jnp.float32)
    cel4, _ = mcwcel(output4, labels4)
    jax.block_until_ready(cel4)
    ref4 = _reference(output4, labels4)
    assert jnp.allclose(cel4, ref4, rtol=1e-4, atol=1e-6), (cel4, ref4)

    print("KERNEL_OK")
</pallas_src>

<mosaic_0001>
module attributes {stable_mosaic.version = 11 : i64} {
  func.func @_mcwcel_kernel(%arg0: i32, %arg1: memref<2x6xf32, #tpu.memory_space<vmem>>, %arg2: memref<2x4xf32, #tpu.memory_space<vmem>>, %arg3: memref<1x1x128xf32, #tpu.memory_space<vmem>>) attributes {dimension_semantics = [#tpu.dimension_semantics<parallel>], iteration_bounds = array<i64: 1>, scalar_prefetch = 0 : i64, scratch_operands = 0 : i64, tpu.core_type = #tpu.core_type<tc>, window_params = [{transform_indices = @transform_0, window_bounds = array<i64: 2, 6>}, {transform_indices = @transform_1, window_bounds = array<i64: 2, 4>}, {transform_indices = @transform_2, window_bounds = array<i64: 1, 1, 128>}]} {
    %c0 = arith.constant 0 : index
    %c0_0 = arith.constant 0 : index
    %0 = vector.load %arg1[%c0, %c0_0] : memref<2x6xf32, #tpu.memory_space<vmem>>, vector<2x4xf32>
    %c0_1 = arith.constant 0 : index
    %c0_2 = arith.constant 0 : index
    %1 = vector.load %arg2[%c0_1, %c0_2] : memref<2x4xf32, #tpu.memory_space<vmem>>, vector<2x4xf32>
    %cst = arith.constant 0.000000e+00 : f32
    %2 = vector.broadcast %cst : f32 to vector<2x4xf32>
    %3 = arith.subf %2, %0 : vector<2x4xf32>
    %4 = math.exp %3 : vector<2x4xf32>
    %cst_3 = arith.constant 1.000000e+00 : f32
    %5 = vector.broadcast %cst_3 : f32 to vector<2x4xf32>
    %6 = arith.addf %5, %4 : vector<2x4xf32>
    %cst_4 = arith.constant 1.000000e+00 : f32
    %7 = vector.broadcast %cst_4 : f32 to vector<2x4xf32>
    %8 = arith.divf %7, %6 : vector<2x4xf32>
    %cst_5 = arith.constant 1.000000e-32 : f32
    %9 = vector.broadcast %cst_5 : f32 to vector<2x4xf32>
    %10 = arith.addf %8, %9 : vector<2x4xf32>
    %11 = math.log %10 : vector<2x4xf32>
    %12 = arith.mulf %1, %11 : vector<2x4xf32>
    %cst_6 = arith.constant 1.000000e+00 : f32
    %13 = vector.broadcast %cst_6 : f32 to vector<2x4xf32>
    %14 = arith.subf %13, %1 : vector<2x4xf32>
    %cst_7 = arith.constant 1.000000e+00 : f32
    %15 = vector.broadcast %cst_7 : f32 to vector<2x4xf32>
    %16 = arith.subf %15, %8 : vector<2x4xf32>
    %cst_8 = arith.constant 1.000000e-32 : f32
    %17 = vector.broadcast %cst_8 : f32 to vector<2x4xf32>
    %18 = arith.addf %16, %17 : vector<2x4xf32>
    %19 = math.log %18 : vector<2x4xf32>
    %20 = arith.mulf %14, %19 : vector<2x4xf32>
    %21 = vector.shape_cast %12 : vector<2x4xf32> to vector<1x2x4xf32>
    %cst_9 = arith.constant dense<0.000000e+00> : vector<1xf32>
    %22 = vector.multi_reduction <add>, %21, %cst_9 [1, 2] : vector<1x2x4xf32> to vector<1xf32>
    %23 = vector.shape_cast %22 : vector<1xf32> to vector<1x1x1xf32>
    %24 = vector.extract %23[0, 0, 0] : f32 from vector<1x1x1xf32>
    %25 = vector.shape_cast %20 : vector<2x4xf32> to vector<1x2x4xf32>
    %cst_10 = arith.constant dense<0.000000e+00> : vector<1xf32>
    %26 = vector.multi_reduction <add>, %25, %cst_10 [1, 2] : vector<1x2x4xf32> to vector<1xf32>
    %27 = vector.shape_cast %26 : vector<1xf32> to vector<1x1x1xf32>
    %28 = vector.extract %27[0, 0, 0] : f32 from vector<1x1x1xf32>
    %29 = vector.shape_cast %1 : vector<2x4xf32> to vector<1x2x4xf32>
    %cst_11 = arith.constant dense<0.000000e+00> : vector<1xf32>
    %30 = vector.multi_reduction <add>, %29, %cst_11 [1, 2] : vector<1x2x4xf32> to vector<1xf32>
    %31 = vector.shape_cast %30 : vector<1xf32> to vector<1x1x1xf32>
    %32 = vector.extract %31[0, 0, 0] : f32 from vector<1x1x1xf32>
    %33 = tpu.iota {dimensions = array<i32: 2>} : vector<1x1x128xi32>
    %c0_i32 = arith.constant 0 : i32
    %34 = vector.broadcast %c0_i32 : i32 to vector<1x1x128xi32>
    %35 = arith.cmpi eq, %33, %34 : vector<1x1x128xi32>
    %c1_i32 = arith.constant 1 : i32
    %36 = vector.broadcast %c1_i32 : i32 to vector<1x1x128xi32>
    %37 = arith.cmpi eq, %33, %36 : vector<1x1x128xi32>
    %c2_i32 = arith.constant 2 : i32
    %38 = vector.broadcast %c2_i32 : i32 to vector<1x1x128xi32>
    %39 = arith.cmpi eq, %33, %38 : vector<1x1x128xi32>
    %cst_12 = arith.constant 0.000000e+00 : f32
    %40 = vector.broadcast %32 : f32 to vector<1x1x128xf32>
    %41 = vector.broadcast %cst_12 : f32 to vector<1x1x128xf32>
    %42 = arith.select %39, %40, %41 : vector<1x1x128xi1>, vector<1x1x128xf32>
    %43 = vector.broadcast %28 : f32 to vector<1x1x128xf32>
    %44 = arith.select %37, %43, %42 : vector<1x1x128xi1>, vector<1x1x128xf32>
    %45 = vector.broadcast %24 : f32 to vector<1x1x128xf32>
    %46 = arith.select %35, %45, %44 : vector<1x1x128xi1>, vector<1x1x128xf32>
    %c0_13 = arith.constant 0 : index
    %c0_14 = arith.constant 0 : index
    %c0_15 = arith.constant 0 : index
    %47 = vector.load %arg3[%c0_13, %c0_14, %c0_15] : memref<1x1x128xf32, #tpu.memory_space<vmem>>, vector<1x1x128xf32>
    tpu.vector_store %arg3[%c0_13, %c0_14, %c0_15], %46 {strides = array<i32>} : memref<1x1x128xf32, #tpu.memory_space<vmem>>, vector<1x1x128xf32>,
    return
  }
  func.func @transform_0(%arg0: i32) -> (i32, i32) {
    %c0_i32 = arith.constant 0 : i32
    %c0_i32_0 = arith.constant 0 : i32
    return %arg0, %c0_i32 : i32, i32
  }
  func.func @transform_1(%arg0: i32) -> (i32, i32) {
    %c0_i32 = arith.constant 0 : i32
    %c0_i32_0 = arith.constant 0 : i32
    return %arg0, %c0_i32 : i32, i32
  }
  func.func @transform_2(%arg0: i32) -> (i32, i32, i32) {
    %c0_i32 = arith.constant 0 : i32
    %c0_i32_0 = arith.constant 0 : i32
    %c0_i32_1 = arith.constant 0 : i32
    return %arg0, %c0_i32, %c0_i32_0 : i32, i32, i32
  }
}

</mosaic_0001>

<llo_original>
// kernel: tpu_custom_call.1
$region0: #{tpu_custom_call.1}
  #allocation0 [shape = 'u32[]', space=smem, size = 0x4, offset = 0x4, fixed_abs, tag = 'smem constant byte address 0x4 - core index']
  #allocation1 [shape = 'u32[144,128]{1,0:T(1,128)}', space=vmem, size = 0x12000, scoped, tag = 'internal scratch']
  %s0 = inlined_call_operand.hbm [shape: f32[2,6], index: 0, kind: input, shape index: {}]
  %s1 = inlined_call_operand.vmem [shape: f32[2,4], index: 1, kind: input, shape index: {}]
  %s2 = inlined_call_operand.hbm [shape: f32[1,1,128], index: 2, kind: output, shape index: {}]
  %s3 = sld [smem:[#allocation0]]
  $region22: #{tpu_custom_call.1} parent=0
    _
  %s5 = ssub.s32 1, %s3
  %s6 = scalar_select 0, %s5, %s3
  $region1: #{tpu_custom_call.1} parent=0
    #allocation2 [shape = 'u8[1024]{0}', space=vmem, size = 0x400, scoped, tag = 'input window, operand 0, single buffered']
    #allocation3 [shape = 's32[1]{0}', space=sflag, size = 0x4, scoped, tag = 'scoped memory for tpu_custom_call.1']
    #allocation4 [shape = 's32[1]{0}', space=sflag, size = 0x4, scoped, tag = 'scoped memory for tpu_custom_call.1']
    #allocation5 [shape = 'u8[512]{0}', space=vmem, size = 0x400, scoped, tag = 'output window, operand 0, single buffered']
    %7 = vsyncpa [#allocation3], 0
    %8 = vsyncpa [#allocation4], 0
    // Predicated region
    $region2: #{tpu_custom_call.1} parent=1 // pred_check
      _
    $region3: #{tpu_custom_call.1} parent=1 // pred_check_branch
      %10 = sbr.rel (0) target = $region5
    $region4: #{tpu_custom_call.1} parent=1 // pred_region
      %s12 = ssub.s32 32, 32
      %13 = vsyncadd [#allocation3], %s12
      %s15 = sshll.u32 [#allocation2], 4
      %s16 = int_to_ptr.vmem [resolvable:$true] %s15
      %18 = dma.hbm_to_vmem [thread:$0]  %s0, 32, %s16, [#allocation3]
    $region5: #{tpu_custom_call.1} parent=1 // pred_fallthru
      _
    // Predicated region
    $region6: #{tpu_custom_call.1} parent=1 // pred_check
      _
    $region7: #{tpu_custom_call.1} parent=1 // pred_check_branch
      %20 = sbr.rel (0) target = $region9
    $region8: #{tpu_custom_call.1} parent=1 // pred_region
      _
    $region9: #{tpu_custom_call.1} parent=1 // pred_fallthru
      _
    // Predicated region
    $region10: #{tpu_custom_call.1} parent=1 // pred_check
      _
    $region11: #{tpu_custom_call.1} parent=1 // pred_check_branch
      %22 = sbr.rel (0) target = $region13
    $region12: #{tpu_custom_call.1} parent=1 // pred_region
      %23 = dma.done [#allocation3], 32
    $region13: #{tpu_custom_call.1} parent=1 // pred_fallthru
      _
    %v24 = vld [vmem:[#allocation2] sm:$0x3]
    %v25 = vld [vmem:[%s1] sm:$0x3]
    %v26 = vsub.f32 0.0, %v24
    %v27 = vmul.f32 %v26, 1.442695
    %v28 = vpow.pop %v27
    %v29 = vadd.f32 %v28, 1.0
    %v30 = vrcp.pop %v29
    %v31 = vmul.f32 1.0, %v30
    %v32 = vadd.f32 %v31, 1e-32
    %v33 = vlog2.pop %v32
    %v34 = vmul.f32 %v33, 0.6931472
    %v35 = vmul.f32 %v25, %v34
    %v36 = vsub.f32 1.0, %v25
    %v37 = vsub.f32 1.0, %v31
    %v38 = vadd.f32 %v37, 1e-32
    %v39 = vlog2.pop %v38
    %v40 = vmul.f32 %v39, 0.6931472
    %v41 = vmul.f32 %v36, %v40
    %vm42 = vcmask 25600
    %v43 = vsel %vm42, %v35, 0.0
    %44 = vadd.xlane.f32.xlu0 %v43
    %v45 = vpop.xlane.xlu0 %44
    %v46 = vrot.slane %v45, 4
    %v47 = vadd.f32 %v45, %v46
    %v48 = vrot.slane %v47, 2
    %v49 = vadd.f32 %v47, %v48
    %v50 = vrot.slane %v49, 1
    %v51 = vadd.f32 %v49, %v50
    %s52 = vtos %v51
    %v53 = vsel %vm42, %v41, 0.0
    %54 = vadd.xlane.f32.xlu0 %v53
    %v55 = vpop.xlane.xlu0 %54
    %v56 = vrot.slane %v55, 4
    %v57 = vadd.f32 %v55, %v56
    %v58 = vrot.slane %v57, 2
    %v59 = vadd.f32 %v57, %v58
    %v60 = vrot.slane %v59, 1
    %v61 = vadd.f32 %v59, %v60
    %s62 = vtos %v61
    %v63 = vsel %vm42, %v25, 0.0
    %64 = vadd.xlane.f32.xlu0 %v63
    %v65 = vpop.xlane.xlu0 %64
    %v66 = vrot.slane %v65, 4
    %v67 = vadd.f32 %v65, %v66
    %v68 = vrot.slane %v67, 2
    %v69 = vadd.f32 %v67, %v68
    %v70 = vrot.slane %v69, 1
    %v71 = vadd.f32 %v69, %v70
    %s72 = vtos %v71
    %v73 = vlaneseq
    %v74 = vand.u32 %v73, 127
    %vm75 = vcmp.eq.s32.totalorder %v74, 0
    %vm76 = vcmp.eq.s32.totalorder %v74, 1
    %vm77 = vcmp.eq.s32.totalorder %v74, 2
    %v78 = vstv %s72
    %v79 = vsel %vm77, %v78, 0.0
    %v80 = vstv %s62
    %v81 = vsel %vm76, %v80, %v79
    %v82 = vstv %s52
    %v83 = vsel %vm75, %v82, %v81
    %84 = vst [vmem:[#allocation5] sm:$0x1] %v83
    // Predicated region
    $region14: #{tpu_custom_call.1} parent=1 // pred_check
      _
    $region15: #{tpu_custom_call.1} parent=1 // pred_check_branch
      %86 = sbr.rel (0) target = $region17
    $region16: #{tpu_custom_call.1} parent=1 // pred_region
      %s88 = ssub.s32 16, 16
      %89 = vsyncadd [#allocation4], %s88
      %s91 = sshll.u32 [#allocation5], 4
      %s92 = int_to_ptr.vmem [resolvable:$true] %s91
      %94 = dma.vmem_to_hbm [thread:$0]  %s92, 16, %s2, [#allocation4]
    $region17: #{tpu_custom_call.1} parent=1 // pred_fallthru
      _
    // Predicated region
    $region18: #{tpu_custom_call.1} parent=1 // pred_check
      _
    $region19: #{tpu_custom_call.1} parent=1 // pred_check_branch
      %96 = sbr.rel (0) target = $region21
    $region20: #{tpu_custom_call.1} parent=1 // pred_region
      %97 = dma.done [#allocation4], 16
    $region21: #{tpu_custom_call.1} parent=1 // pred_fallthru
      _
    %98 = vsyncpa [#allocation3], 1
    %99 = vsyncpa [#allocation4], 1

</llo_original>
